<compile_context>
chip_gen: v7x
topology: tpu7x:2x2x1
jax: 0.10.0
libtpu: 0.0.40
codegen_flags: <defaults>
</compile_context>

<pallas_src>
import functools

import jax
import jax.numpy as jnp
from jax import lax
from jax.experimental import pallas as pl
from jax.experimental.pallas import tpu as pltpu

HIDDEN = 128
LANES = 128


def bcq_fused_kernel(x_ref, wc1_ref, bc1_ref, wc2_ref, bc2_ref, out_ref, *,
                     num_actions):
    A = num_actions

    # ---- fused first layer (both branches): (TM, num_obs) @ (num_obs, 2H).
    # Operands may be bf16; accumulate in f32 on the MXU.
    hc = jnp.dot(x_ref[...], wc1_ref[...], preferred_element_type=jnp.float32)
    hc = jnp.maximum(hc + bc1_ref[...], 0.0)                      # bias+ReLU in f32

    # ---- fused second layer: block-diagonal, columns zero-padded to 128 lanes
    # -> (TM, 128) = [ q | logits | 0...0 ].  Lane-dense result & store.
    y = jnp.dot(hc.astype(wc2_ref.dtype), wc2_ref[...],
                preferred_element_type=jnp.float32)
    y = y + bc2_ref[...]

    # ---- masked, in-place log-softmax over the imitation lanes [A, 2A).
    # No slicing / concatenation: everything stays in y's vregs.
    lane = lax.broadcasted_iota(jnp.int32, y.shape, 1)
    im = jnp.logical_and(lane >= A, lane < 2 * A)
    m = jnp.max(jnp.where(im, y, -jnp.inf), axis=-1, keepdims=True)
    e = jnp.exp(jnp.where(im, y - m, -jnp.inf))                   # 0 off-mask
    lse = jnp.log(jnp.sum(e, axis=-1, keepdims=True))
    out_ref[...] = (y - jnp.where(im, m + lse, 0.0)).astype(out_ref.dtype)


def bcq_forward(x, params, *, tm=None, matmul_dtype=jnp.bfloat16):
    """x: (B, num_obs) float32. params: per-branch weights/biases with
    (in_features, out_features) layout. Returns (q, log_p), both float32."""
    B, num_obs = x.shape
    H = params["w1"].shape[1]
    A = params["w2"].shape[1]
    out_w = max(LANES, ((2 * A + LANES - 1) // LANES) * LANES)    # lane-dense width
    f32 = jnp.float32
    mm_itemsize = jnp.dtype(matmul_dtype).itemsize

    # ---- Build fused parameters once in the wrapper (outside the kernel) ----
    wc1 = jnp.concatenate([params["w1"], params["wi1"]], axis=1)  # (num_obs, 2H)
    wc1 = wc1.astype(matmul_dtype)
    bc1 = jnp.concatenate([params["b1"], params["bi1"]], axis=1).astype(f32)

    wc2 = jnp.zeros((2 * H, out_w), f32)                          # block-diag, padded
    wc2 = wc2.at[:H, :A].set(params["w2"]).at[H:, A:2 * A].set(params["wi2"])
    wc2 = wc2.astype(matmul_dtype)
    bc2 = jnp.zeros((1, out_w), f32)
    bc2 = bc2.at[:, :A].set(params["b2"]).at[:, A:2 * A].set(params["bi2"])

    x_mm = x.astype(matmul_dtype)

    # ---- Batch tile: fixed cap, ragged last block handled by Pallas padding.
    if tm is None:
        tm = 2048
        while tm > 8 and B <= tm // 2:
            tm //= 2
        # v7x megacore: prefer >= 2 grid steps when the batch allows it.
        if pl.cdiv(B, tm) < 2 and tm >= 16:
            tm //= 2
    tm = max(8, ((tm + 7) // 8) * 8)                              # sublane-aligned
    grid = (pl.cdiv(B, tm),)

    # ---- Explicit VMEM budget with headroom (v7x: 64 MiB physical).
    bytes_needed = (
        2 * tm * num_obs * mm_itemsize                            # x double buffer
        + 2 * tm * out_w * 4                                      # out double buffer
        + wc1.size * mm_itemsize + wc2.size * mm_itemsize         # resident weights
        + (bc1.size + bc2.size) * 4
        + tm * 2 * H * 4 + 2 * tm * out_w * 4                     # hc / y live values
    )
    vmem_limit = int(min(max(2 * bytes_needed, 16 << 20), 48 << 20))

    cost = pl.CostEstimate(
        flops=2 * B * (num_obs * 2 * H + 2 * H * out_w),
        transcendentals=B * (A + 1),
        bytes_accessed=(x_mm.size * mm_itemsize
                        + (wc1.size + wc2.size) * mm_itemsize
                        + 4 * (bc1.size + bc2.size + B * out_w)),
    )

    kernel = functools.partial(bcq_fused_kernel, num_actions=A)

    fused = pl.pallas_call(
        kernel,
        out_shape=jax.ShapeDtypeStruct((B, out_w), f32),
        grid=grid,
        in_specs=[
            pl.BlockSpec((tm, num_obs), lambda i: (i, 0)),        # x: batch-tiled
            pl.BlockSpec(wc1.shape, lambda i: (0, 0)),            # weights resident
            pl.BlockSpec(bc1.shape, lambda i: (0, 0)),
            pl.BlockSpec(wc2.shape, lambda i: (0, 0)),
            pl.BlockSpec(bc2.shape, lambda i: (0, 0)),
        ],
        out_specs=pl.BlockSpec((tm, out_w), lambda i: (i, 0)),
        compiler_params=pltpu.CompilerParams(
            dimension_semantics=("parallel",),
            vmem_limit_bytes=vmem_limit),
        cost_estimate=cost,
    )(x_mm, wc1, bc1, wc2, bc2)

    q = fused[:, :A]
    logp = fused[:, A:2 * A]
    return q, logp


def init_params(key, num_obs, num_actions, hidden=HIDDEN):
    """Deterministic synthetic parameters (PyTorch Linear shapes, transposed)."""
    ks = jax.random.split(key, 8)

    def lin(kw, kb, fan_in, fan_out):
        bound = 1.0 / jnp.sqrt(fan_in)
        w = jax.random.uniform(kw, (fan_in, fan_out), jnp.float32, -bound, bound)
        b = jax.random.uniform(kb, (1, fan_out), jnp.float32, -bound, bound)
        return w, b

    w1, b1 = lin(ks[0], ks[1], num_obs, hidden)
    w2, b2 = lin(ks[2], ks[3], hidden, num_actions)
    wi1, bi1 = lin(ks[4], ks[5], num_obs, hidden)
    wi2, bi2 = lin(ks[6], ks[7], hidden, num_actions)
    return dict(w1=w1, b1=b1, w2=w2, b2=b2, wi1=wi1, bi1=bi1, wi2=wi2, bi2=bi2)


def bcq_reference(x, p):
    """Pure-JAX reference for correctness check."""
    h = jnp.maximum(x @ p["w1"] + p["b1"], 0.0)
    q = h @ p["w2"] + p["b2"]
    hi = jnp.maximum(x @ p["wi1"] + p["bi1"], 0.0)
    logits = hi @ p["wi2"] + p["bi2"]
    logp = jax.nn.log_softmax(logits, axis=1)
    return q, logp


if __name__ == "__main__":
    key = jax.random.PRNGKey(0)
    k_x, k_p = jax.random.split(key)

    B, num_obs, num_actions = 8, 32, 16
    x = jax.random.normal(k_x, (B, num_obs), jnp.float32)
    params = init_params(k_p, num_obs, num_actions)

    q_ref, logp_ref = bcq_reference(x, params)

    # Full-f32 operand path: tight check against the pure-JAX reference.
    q32, logp32 = bcq_forward(x, params, matmul_dtype=jnp.float32)
    q32 = jax.block_until_ready(q32)
    logp32 = jax.block_until_ready(logp32)
    assert jnp.allclose(q32, q_ref, atol=1e-4, rtol=1e-4)
    assert jnp.allclose(logp32, logp_ref, atol=1e-4, rtol=1e-4)

    # Default bf16 matmul-operand path (bandwidth-optimized): f32 accumulation
    # and f32 epilogue, so only operand-rounding error remains.
    q, logp = bcq_forward(x, params)
    q = jax.block_until_ready(q)
    logp = jax.block_until_ready(logp)
    assert jnp.allclose(q, q_ref, atol=3e-2, rtol=3e-2)
    assert jnp.allclose(logp, logp_ref, atol=3e-2, rtol=3e-2)

    print("KERNEL_OK")
</pallas_src>

<mosaic_0001>
module attributes {stable_mosaic.version = 11 : i64} {
  func.func @bcq_fused_kernel(%arg0: i32, %arg1: memref<8x32xf32, #tpu.memory_space<vmem>>, %arg2: memref<32x256xf32, #tpu.memory_space<vmem>>, %arg3: memref<1x256xf32, #tpu.memory_space<vmem>>, %arg4: memref<256x128xf32, #tpu.memory_space<vmem>>, %arg5: memref<1x128xf32, #tpu.memory_space<vmem>>, %arg6: memref<8x128xf32, #tpu.memory_space<vmem>>) attributes {dimension_semantics = [#tpu.dimension_semantics<parallel>], iteration_bounds = array<i64: 1>, scalar_prefetch = 0 : i64, scratch_operands = 0 : i64, tpu.core_type = #tpu.core_type<tc>, window_params = [{transform_indices = @transform_0, window_bounds = array<i64: 8, 32>}, {pipeline_mode = #tpu.pipeline_mode<synchronous>, transform_indices = @transform_1, window_bounds = array<i64: 32, 256>}, {pipeline_mode = #tpu.pipeline_mode<synchronous>, transform_indices = @transform_2, window_bounds = array<i64: 1, 256>}, {pipeline_mode = #tpu.pipeline_mode<synchronous>, transform_indices = @transform_3, window_bounds = array<i64: 256, 128>}, {pipeline_mode = #tpu.pipeline_mode<synchronous>, transform_indices = @transform_4, window_bounds = array<i64: 1, 128>}, {transform_indices = @transform_5, window_bounds = array<i64: 8, 128>}]} {
    %c0 = arith.constant 0 : index
    %c0_0 = arith.constant 0 : index
    %0 = vector.load %arg1[%c0, %c0_0] : memref<8x32xf32, #tpu.memory_space<vmem>>, vector<8x32xf32>
    %c0_1 = arith.constant 0 : index
    %c0_2 = arith.constant 0 : index
    %1 = vector.load %arg2[%c0_1, %c0_2] : memref<32x256xf32, #tpu.memory_space<vmem>>, vector<32x256xf32>
    %cst = arith.constant dense<0.000000e+00> : vector<8x256xf32>
    %2 = tpu.matmul %0, %1, %cst {dimension_numbers = #tpu.dot_dimension_numbers<[1], [0], [0], [1], [0, 0, 1, 1], [], []>} : vector<8x32xf32>, vector<32x256xf32>, vector<8x256xf32> -> vector<8x256xf32>
    %c0_3 = arith.constant 0 : index
    %c0_4 = arith.constant 0 : index
    %3 = vector.load %arg3[%c0_3, %c0_4] : memref<1x256xf32, #tpu.memory_space<vmem>>, vector<1x256xf32>
    %4 = vector.broadcast %3 : vector<1x256xf32> to vector<8x256xf32>
    %5 = arith.addf %2, %4 : vector<8x256xf32>
    %cst_5 = arith.constant 0.000000e+00 : f32
    %6 = vector.broadcast %cst_5 : f32 to vector<8x256xf32>
    %7 = arith.maximumf %5, %6 : vector<8x256xf32>
    %c0_6 = arith.constant 0 : index
    %c0_7 = arith.constant 0 : index
    %8 = vector.load %arg4[%c0_6, %c0_7] : memref<256x128xf32, #tpu.memory_space<vmem>>, vector<256x128xf32>
    %cst_8 = arith.constant dense<0.000000e+00> : vector<8x128xf32>
    %9 = tpu.matmul %7, %8, %cst_8 {dimension_numbers = #tpu.dot_dimension_numbers<[1], [0], [0], [1], [0, 0, 1, 1], [], []>} : vector<8x256xf32>, vector<256x128xf32>, vector<8x128xf32> -> vector<8x128xf32>
    %c0_9 = arith.constant 0 : index
    %c0_10 = arith.constant 0 : index
    %10 = vector.load %arg5[%c0_9, %c0_10] : memref<1x128xf32, #tpu.memory_space<vmem>>, vector<1x128xf32>
    %11 = vector.broadcast %10 : vector<1x128xf32> to vector<8x128xf32>
    %12 = arith.addf %9, %11 : vector<8x128xf32>
    %13 = tpu.iota {dimensions = array<i32: 1>} : vector<8x128xi32>
    %c16_i32 = arith.constant 16 : i32
    %14 = vector.broadcast %c16_i32 : i32 to vector<8x128xi32>
    %15 = arith.cmpi sge, %13, %14 : vector<8x128xi32>
    %c32_i32 = arith.constant 32 : i32
    %16 = vector.broadcast %c32_i32 : i32 to vector<8x128xi32>
    %17 = arith.cmpi slt, %13, %16 : vector<8x128xi32>
    %18 = arith.andi %15, %17 : vector<8x128xi1>
    %cst_11 = arith.constant 0xFF800000 : f32
    %19 = vector.broadcast %cst_11 : f32 to vector<8x128xf32>
    %20 = arith.select %18, %12, %19 : vector<8x128xi1>, vector<8x128xf32>
    %cst_12 = arith.constant dense<0xFF800000> : vector<8xf32>
    %21 = vector.multi_reduction <maximumf>, %20, %cst_12 [1] : vector<8x128xf32> to vector<8xf32>
    %22 = vector.shape_cast %21 : vector<8xf32> to vector<8x1xf32>
    %23 = vector.broadcast %22 : vector<8x1xf32> to vector<8x128xf32>
    %24 = arith.subf %12, %23 : vector<8x128xf32>
    %cst_13 = arith.constant 0xFF800000 : f32
    %25 = vector.broadcast %cst_13 : f32 to vector<8x128xf32>
    %26 = arith.select %18, %24, %25 : vector<8x128xi1>, vector<8x128xf32>
    %27 = math.exp %26 : vector<8x128xf32>
    %cst_14 = arith.constant dense<0.000000e+00> : vector<8xf32>
    %28 = vector.multi_reduction <add>, %27, %cst_14 [1] : vector<8x128xf32> to vector<8xf32>
    %29 = vector.shape_cast %28 : vector<8xf32> to vector<8x1xf32>
    %30 = math.log %29 : vector<8x1xf32>
    %31 = arith.addf %22, %30 : vector<8x1xf32>
    %cst_15 = arith.constant 0.000000e+00 : f32
    %32 = vector.shape_cast %31 : vector<8x1xf32> to vector<8x1xf32>
    %33 = vector.broadcast %32 : vector<8x1xf32> to vector<8x128xf32>
    %34 = vector.broadcast %cst_15 : f32 to vector<8x128xf32>
    %35 = arith.select %18, %33, %34 : vector<8x128xi1>, vector<8x128xf32>
    %36 = arith.subf %12, %35 : vector<8x128xf32>
    %c0_16 = arith.constant 0 : index
    %c0_17 = arith.constant 0 : index
    %37 = vector.load %arg6[%c0_16, %c0_17] : memref<8x128xf32, #tpu.memory_space<vmem>>, vector<8x128xf32>
    tpu.vector_store %arg6[%c0_16, %c0_17], %36 {strides = array<i32>} : memref<8x128xf32, #tpu.memory_space<vmem>>, vector<8x128xf32>,
    return
  }
  func.func @transform_0(%arg0: i32) -> (i32, i32) {
    %c0_i32 = arith.constant 0 : i32
    %c0_i32_0 = arith.constant 0 : i32
    return %arg0, %c0_i32 : i32, i32
  }
  func.func @transform_1(%arg0: i32) -> (i32, i32) {
    %c0_i32 = arith.constant 0 : i32
    %c0_i32_0 = arith.constant 0 : i32
    %c0_i32_1 = arith.constant 0 : i32
    return %c0_i32, %c0_i32_0 : i32, i32
  }
  func.func @transform_2(%arg0: i32) -> (i32, i32) {
    %c0_i32 = arith.constant 0 : i32
    %c0_i32_0 = arith.constant 0 : i32
    %c0_i32_1 = arith.constant 0 : i32
    return %c0_i32, %c0_i32_0 : i32, i32
  }
  func.func @transform_3(%arg0: i32) -> (i32, i32) {
    %c0_i32 = arith.constant 0 : i32
    %c0_i32_0 = arith.constant 0 : i32
    %c0_i32_1 = arith.constant 0 : i32
    return %c0_i32, %c0_i32_0 : i32, i32
  }
  func.func @transform_4(%arg0: i32) -> (i32, i32) {
    %c0_i32 = arith.constant 0 : i32
    %c0_i32_0 = arith.constant 0 : i32
    %c0_i32_1 = arith.constant 0 : i32
    return %c0_i32, %c0_i32_0 : i32, i32
  }
  func.func @transform_5(%arg0: i32) -> (i32, i32) {
    %c0_i32 = arith.constant 0 : i32
    %c0_i32_0 = arith.constant 0 : i32
    return %arg0, %c0_i32 : i32, i32
  }
}

</mosaic_0001>

<llo_original>
// kernel: tpu_custom_call.1
$region0: #{tpu_custom_call.1}
  #allocation0 [shape = 'u32[]', space=smem, size = 0x4, offset = 0x4, fixed_abs, tag = 'smem constant byte address 0x4 - core index']
  #allocation1 [shape = 'u32[144,128]{1,0:T(1,128)}', space=vmem, size = 0x12000, scoped, tag = 'internal scratch']
  %s0 = inlined_call_operand.hbm [shape: f32[8,32], index: 0, kind: input, shape index: {}]
  %s1 = inlined_call_operand.hbm [shape: f32[32,256], index: 1, kind: input, shape index: {}]
  %s2 = inlined_call_operand.vmem [shape: f32[1,256], index: 2, kind: input, shape index: {}]
  %s3 = inlined_call_operand.hbm [shape: f32[256,128], index: 3, kind: input, shape index: {}]
  %s4 = inlined_call_operand.vmem [shape: f32[1,128], index: 4, kind: input, shape index: {}]
  %s5 = inlined_call_operand.hbm [shape: f32[8,128], index: 5, kind: output, shape index: {}]
  %s6 = sld [smem:[#allocation0]]
  $region42: #{tpu_custom_call.1} parent=0
    _
  %s8 = ssub.s32 1, %s6
  %s9 = scalar_select 0, %s8, %s6
  $region1: #{tpu_custom_call.1} parent=0
    #allocation2 [shape = 'u8[4096]{0}', space=vmem, size = 0x1000, scoped, tag = 'input window, operand 0, single buffered']
    #allocation3 [shape = 's32[1]{0}', space=sflag, size = 0x4, scoped, tag = 'scoped memory for tpu_custom_call.1']
    #allocation4 [shape = 's32[1]{0}', space=sflag, size = 0x4, scoped, tag = 'scoped memory for tpu_custom_call.1']
    #allocation5 [shape = 'u8[32768]{0}', space=vmem, size = 0x8000, scoped, tag = 'input window, operand 1, single buffered']
    #allocation6 [shape = 's32[1]{0}', space=sflag, size = 0x4, scoped, tag = 'scoped memory for tpu_custom_call.1']
    #allocation7 [shape = 'u8[131072]{0}', space=vmem, size = 0x20000, scoped, tag = 'input window, operand 3, single buffered']
    #allocation8 [shape = 'u8[4096]{0}', space=vmem, size = 0x1000, scoped, tag = 'output window, operand 0, single buffered']
    %10 = vsyncpa [#allocation3], 0
    %11 = vsyncpa [#allocation6], 0
    %12 = vsyncpa [#allocation4], 0
    // Predicated region
    $region2: #{tpu_custom_call.1} parent=1 // pred_check
      _
    $region3: #{tpu_custom_call.1} parent=1 // pred_check_branch
      %14 = sbr.rel (0) target = $region5
    $region4: #{tpu_custom_call.1} parent=1 // pred_region
      %s16 = ssub.s32 128, 128
      %17 = vsyncadd [#allocation3], %s16
      %s19 = sshll.u32 [#allocation2], 4
      %s20 = int_to_ptr.vmem [resolvable:$true] %s19
      %22 = dma.hbm_to_vmem [thread:$0]  %s0, 128, %s20, [#allocation3]
    $region5: #{tpu_custom_call.1} parent=1 // pred_fallthru
      _
    // Predicated region
    $region6: #{tpu_custom_call.1} parent=1 // pred_check
      _
    $region7: #{tpu_custom_call.1} parent=1 // pred_check_branch
      %24 = sbr.rel (0) target = $region9
    $region8: #{tpu_custom_call.1} parent=1 // pred_region
      %s26 = ssub.s32 1024, 1024
      %27 = vsyncadd [#allocation6], %s26
      %s28 = sshll.u32 [#allocation5], 4
      %s29 = int_to_ptr.vmem [resolvable:$true] %s28
      %34 = dma.hbm_to_vmem [thread:$0]  %s1, 1024, %s29, [#allocation6], 256, 256, 16
    $region9: #{tpu_custom_call.1} parent=1 // pred_fallthru
      _
    // Predicated region
    $region10: #{tpu_custom_call.1} parent=1 // pred_check
      _
    $region11: #{tpu_custom_call.1} parent=1 // pred_check_branch
      %36 = sbr.rel (0) target = $region13
    $region12: #{tpu_custom_call.1} parent=1 // pred_region
      _
    $region13: #{tpu_custom_call.1} parent=1 // pred_fallthru
      _
    // Predicated region
    $region14: #{tpu_custom_call.1} parent=1 // pred_check
      _
    $region15: #{tpu_custom_call.1} parent=1 // pred_check_branch
      %38 = sbr.rel (0) target = $region17
    $region16: #{tpu_custom_call.1} parent=1 // pred_region
      %s40 = ssub.s32 4096, 4096
      %41 = vsyncadd [#allocation6], %s40
      %s42 = sshll.u32 [#allocation7], 4
      %s43 = int_to_ptr.vmem [resolvable:$true] %s42
      %48 = dma.hbm_to_vmem [thread:$0]  %s3, 4096, %s43, [#allocation6], 128, 128, 8
    $region17: #{tpu_custom_call.1} parent=1 // pred_fallthru
      _
    // Predicated region
    $region18: #{tpu_custom_call.1} parent=1 // pred_check
      _
    $region19: #{tpu_custom_call.1} parent=1 // pred_check_branch
      %50 = sbr.rel (0) target = $region21
    $region20: #{tpu_custom_call.1} parent=1 // pred_region
      _
    $region21: #{tpu_custom_call.1} parent=1 // pred_fallthru
      _
    // Predicated region
    $region22: #{tpu_custom_call.1} parent=1 // pred_check
      _
    $region23: #{tpu_custom_call.1} parent=1 // pred_check_branch
      %52 = sbr.rel (0) target = $region25
    $region24: #{tpu_custom_call.1} parent=1 // pred_region
      %53 = dma.done [#allocation3], 128
    $region25: #{tpu_custom_call.1} parent=1 // pred_fallthru
      _
    // Predicated region
    $region26: #{tpu_custom_call.1} parent=1 // pred_check
      _
    $region27: #{tpu_custom_call.1} parent=1 // pred_check_branch
      %55 = sbr.rel (0) target = $region29
    $region28: #{tpu_custom_call.1} parent=1 // pred_region
      %56 = dma.done [#allocation6], 1024
    $region29: #{tpu_custom_call.1} parent=1 // pred_fallthru
      _
    // Predicated region
    $region30: #{tpu_custom_call.1} parent=1 // pred_check
      _
    $region31: #{tpu_custom_call.1} parent=1 // pred_check_branch
      %58 = sbr.rel (0) target = $region33
    $region32: #{tpu_custom_call.1} parent=1 // pred_region
      %59 = dma.done [#allocation6], 4096
    $region33: #{tpu_custom_call.1} parent=1 // pred_fallthru
      _
    %v60 = vld [vmem:[#allocation2] sm:$0xff]
    %v61 = vld [vmem:[#allocation5] sm:$0xff]
    %v62 = vld [vmem:[#allocation5 + $0x8] sm:$0xff]
    %v63 = vld [vmem:[#allocation5 + $0x10] sm:$0xff]
    %v64 = vld [vmem:[#allocation5 + $0x18] sm:$0xff]
    %v65 = vld [vmem:[#allocation5 + $0x20] sm:$0xff]
    %v66 = vld [vmem:[#allocation5 + $0x28] sm:$0xff]
    %v67 = vld [vmem:[#allocation5 + $0x30] sm:$0xff]
    %v68 = vld [vmem:[#allocation5 + $0x38] sm:$0xff]
    %v69 = vld [vmem:[%s2] sm:$0x3]
    %v71 = vlaneseq
    %v72 = vshrl.u32 %v71, 7
    %v73 = vsub.s32 0, %v72
    %v74 = vrot.slane %v69, %v73
    %v75 = vlaneseq
    %v76 = vshrl.u32 %v75, 7
    %v77 = vsub.s32 1, %v76
    %v78 = vrot.slane %v69, %v77
    %vm81 = vcmask 261120
    %v83 = vsel %vm81, %v60, 0
    %85 = vmatprep.subr.mxu0 %v62
    %86 = vmatpush1.msra.mxu0 %v61
    %87 = vmatprep.subr.mxu0 %v64
    %88 = vmatpush1.msra.mxu0 %v63
    %89 = vmatprep.subr.mxu0 %v66
    %90 = vmatpush1.msra.mxu0 %v65
    %91 = vmatprep.subr.mxu0 %v68
    %92 = vmatpush1.msra.mxu0 %v67
    %93 = vmatprep.subr.mxu0 0.0
    %94 = vmatpush1.msra.mxu0 0.0
    %95 = vmatprep.subr.mxu0 0.0
    %96 = vmatpush1.msra.mxu0 0.0
    %97 = vmatprep.subr.mxu0 0.0
    %98 = vmatpush1.msra.mxu0 0.0
    %99 = vmatprep.subr.mxu0 0.0
    %100 = vmatpush1.msra.mxu0 0.0
    %101 = vmatprep.subr.mxu0 0.0
    %102 = vmatpush1.msra.mxu0 0.0
    %103 = vmatprep.subr.mxu0 0.0
    %104 = vmatpush1.msra.mxu0 0.0
    %105 = vmatprep.subr.mxu0 0.0
    %106 = vmatpush1.msra.mxu0 0.0
    %107 = vmatprep.subr.mxu0 0.0
    %108 = vmatpush1.msra.mxu0 0.0
    %109 = vmatprep.subr.mxu0 0.0
    %110 = vmatpush1.msra.mxu0 0.0
    %111 = vmatprep.subr.mxu0 0.0
    %112 = vmatpush1.msra.mxu0 0.0
    %113 = vmatprep.subr.mxu0 0.0
    %114 = vmatpush1.msra.mxu0 0.0
    %115 = vmatprep.subr.mxu0 0.0
    %116 = vmatpush1.msra.mxu0 0.0
    %117 = vmatprep.subr.mxu0 0.0
    %118 = vmatpush1.msra.mxu0 0.0
    %119 = vmatprep.subr.mxu0 0.0
    %120 = vmatpush1.msra.mxu0 0.0
    %121 = vmatprep.subr.mxu0 0.0
    %122 = vmatpush1.msra.mxu0 0.0
    %123 = vmatprep.subr.mxu0 0.0
    %124 = vmatpush1.msra.mxu0 0.0
    %125 = vmatprep.subr.mxu0 0.0
    %126 = vmatpush1.msra.mxu0 0.0
    %127 = vmatprep.subr.mxu0 0.0
    %128 = vmatpush1.msra.mxu0 0.0
    %129 = vmatprep.subr.mxu0 0.0
    %130 = vmatpush1.msra.mxu0 0.0
    %131 = vmatprep.subr.mxu0 0.0
    %132 = vmatpush1.msra.mxu0 0.0
    %133 = vmatprep.subr.mxu0 0.0
    %134 = vmatpush1.msra.mxu0 0.0
    %135 = vmatprep.subr.mxu0 0.0
    %136 = vmatpush1.msra.mxu0 0.0
    %137 = vmatprep.subr.mxu0 0.0
    %138 = vmatpush1.msra.mxu0 0.0
    %139 = vmatprep.subr.mxu0 0.0
    %140 = vmatpush1.msra.mxu0 0.0
    %141 = vmatprep.subr.mxu0 0.0
    %142 = vmatpush1.msra.mxu0 0.0
    %143 = vmatprep.subr.mxu0 0.0
    %144 = vmatpush1.msra.mxu0 0.0
    %145 = vmatprep.subr.mxu0 0.0
    %146 = vmatpush1.msra.mxu0 0.0
    %147 = vmatprep.subr.mxu0 0.0
    %148 = vmatpush1.msra.mxu0 0.0
    %149 = vmatprep.mubr.f32.mxu0 0.0
    %150 = vmatmul.mubr.f32.gmra.mrb[0].mxu0 %v83
    %v151 = vpop.f32.mrb[0].mxu0
    %v152 = vadd.f32 %v74, %v151
    %v153 = vpop.f32.mrb[0].mxu0
    %v154 = vadd.f32 %v78, %v153
    %155 = vdwg.mxu0
    %v156 = vmax.f32 %v152, 0.0
    %v157 = vmax.f32 %v154, 0.0
    %v158 = vld [vmem:[#allocation7] sm:$0xff]
    %v159 = vld [vmem:[#allocation7 + $0x8] sm:$0xff]
    %v160 = vld [vmem:[#allocation7 + $0x10] sm:$0xff]
    %v161 = vld [vmem:[#allocation7 + $0x18] sm:$0xff]
    %v162 = vld [vmem:[#allocation7 + $0x20] sm:$0xff]
    %v163 = vld [vmem:[#allocation7 + $0x28] sm:$0xff]
    %v164 = vld [vmem:[#allocation7 + $0x30] sm:$0xff]
    %v165 = vld [vmem:[#allocation7 + $0x38] sm:$0xff]
    %v166 = vld [vmem:[#allocation7 + $0x40] sm:$0xff]
    %v167 = vld [vmem:[#allocation7 + $0x48] sm:$0xff]
    %v168 = vld [vmem:[#allocation7 + $0x50] sm:$0xff]
    %v169 = vld [vmem:[#allocation7 + $0x58] sm:$0xff]
    %v170 = vld [vmem:[#allocation7 + $0x60] sm:$0xff]
    %v171 = vld [vmem:[#allocation7 + $0x68] sm:$0xff]
    %v172 = vld [vmem:[#allocation7 + $0x70] sm:$0xff]
    %v173 = vld [vmem:[#allocation7 + $0x78] sm:$0xff]
    %v174 = vld [vmem:[#allocation7 + $0x80] sm:$0xff]
    %v175 = vld [vmem:[#allocation7 + $0x88] sm:$0xff]
    %v176 = vld [vmem:[#allocation7 + $0x90] sm:$0xff]
    %v177 = vld [vmem:[#allocation7 + $0x98] sm:$0xff]
    %v178 = vld [vmem:[#allocation7 + $0xa0] sm:$0xff]
    %v179 = vld [vmem:[#allocation7 + $0xa8] sm:$0xff]
    %v180 = vld [vmem:[#allocation7 + $0xb0] sm:$0xff]
    %v181 = vld [vmem:[#allocation7 + $0xb8] sm:$0xff]
    %v182 = vld [vmem:[#allocation7 + $0xc0] sm:$0xff]
    %v183 = vld [vmem:[#allocation7 + $0xc8] sm:$0xff]
    %v184 = vld [vmem:[#allocation7 + $0xd0] sm:$0xff]
    %v185 = vld [vmem:[#allocation7 + $0xd8] sm:$0xff]
    %v186 = vld [vmem:[#allocation7 + $0xe0] sm:$0xff]
    %v187 = vld [vmem:[#allocation7 + $0xe8] sm:$0xff]
    %v188 = vld [vmem:[#allocation7 + $0xf0] sm:$0xff]
    %v189 = vld [vmem:[#allocation7 + $0xf8] sm:$0xff]
    %v190 = vld [vmem:[%s4] sm:$0x1]
    %v192 = vlaneseq
    %v193 = vshrl.u32 %v192, 7
    %v194 = vsub.s32 0, %v193
    %v195 = vrot.slane %v190, %v194
    %197 = vmatprep.subr.mxu0 0.0
    %198 = vmatpush1.msra.mxu0 %v158
    %199 = vmatprep.subr.mxu0 0.0
    %200 = vmatpush1.msra.mxu0 %v159
    %201 = vmatprep.subr.mxu0 0.0
    %202 = vmatpush1.msra.mxu0 %v160
    %203 = vmatprep.subr.mxu0 0.0
    %204 = vmatpush1.msra.mxu0 %v161
    %205 = vmatprep.subr.mxu0 0.0
    %206 = vmatpush1.msra.mxu0 %v162
    %207 = vmatprep.subr.mxu0 0.0
    %208 = vmatpush1.msra.mxu0 %v163
    %209 = vmatprep.subr.mxu0 0.0
    %210 = vmatpush1.msra.mxu0 %v164
    %211 = vmatprep.subr.mxu0 0.0
    %212 = vmatpush1.msra.mxu0 %v165
    %213 = vmatprep.subr.mxu0 0.0
    %214 = vmatpush1.msra.mxu0 %v166
    %215 = vmatprep.subr.mxu0 0.0
    %216 = vmatpush1.msra.mxu0 %v167
    %217 = vmatprep.subr.mxu0 0.0
    %218 = vmatpush1.msra.mxu0 %v168
    %219 = vmatprep.subr.mxu0 0.0
    %220 = vmatpush1.msra.mxu0 %v169
    %221 = vmatprep.subr.mxu0 0.0
    %222 = vmatpush1.msra.mxu0 %v170
    %223 = vmatprep.subr.mxu0 0.0
    %224 = vmatpush1.msra.mxu0 %v171
    %225 = vmatprep.subr.mxu0 0.0
    %226 = vmatpush1.msra.mxu0 %v172
    %227 = vmatprep.subr.mxu0 0.0
    %228 = vmatpush1.msra.mxu0 %v173
    %229 = vmatprep.subr.mxu0 0.0
    %230 = vmatpush1.msra.mxu0 %v174
    %231 = vmatprep.subr.mxu0 0.0
    %232 = vmatpush1.msra.mxu0 %v175
    %233 = vmatprep.subr.mxu0 0.0
    %234 = vmatpush1.msra.mxu0 %v176
    %235 = vmatprep.subr.mxu0 0.0
    %236 = vmatpush1.msra.mxu0 %v177
    %237 = vmatprep.subr.mxu0 0.0
    %238 = vmatpush1.msra.mxu0 %v178
    %239 = vmatprep.subr.mxu0 0.0
    %240 = vmatpush1.msra.mxu0 %v179
    %241 = vmatprep.subr.mxu0 0.0
    %242 = vmatpush1.msra.mxu0 %v180
    %243 = vmatprep.subr.mxu0 0.0
    %244 = vmatpush1.msra.mxu0 %v181
    %245 = vmatprep.subr.mxu0 0.0
    %246 = vmatpush1.msra.mxu0 %v182
    %247 = vmatprep.subr.mxu0 0.0
    %248 = vmatpush1.msra.mxu0 %v183
    %249 = vmatprep.subr.mxu0 0.0
    %250 = vmatpush1.msra.mxu0 %v184
    %251 = vmatprep.subr.mxu0 0.0
    %252 = vmatpush1.msra.mxu0 %v185
    %253 = vmatprep.subr.mxu0 0.0
    %254 = vmatpush1.msra.mxu0 %v186
    %255 = vmatprep.subr.mxu0 0.0
    %256 = vmatpush1.msra.mxu0 %v187
    %257 = vmatprep.subr.mxu0 0.0
    %258 = vmatpush1.msra.mxu0 %v188
    %259 = vmatprep.subr.mxu0 0.0
    %260 = vmatpush1.msra.mxu0 %v189
    %261 = vmatprep.mubr.f32.mxu0 %v157
    %262 = vmatmul.mubr.f32.gmra.mrb[0].mxu0 %v156
    %v263 = vpop.f32.mrb[0].mxu0
    %v264 = vadd.f32 %v195, %v263
    %v265 = vpop.f32.mrb[0].mxu0
    %266 = vdwg.mxu0
    %v267 = vlaneseq
    %v268 = vand.u32 %v267, 127
    %vm269 = vcmp.ge.s32.totalorder %v268, 16
    %vm270 = vcmp.lt.s32.totalorder %v268, 32
    %vm271 = vmand %vm269, %vm270
    %v272 = vsel %vm271, %v264, -inf
    %273 = vmax.xlane.f32.xlu0 %v272
    %v274 = vpop.xlane.xlu0 %273
    %v275 = vsub.f32 %v264, %v274
    %v276 = vsel %vm271, %v275, -inf
    %v277 = vmul.f32 %v276, 1.442695
    %v278 = vpow.pop %v277
    %279 = vadd.xlane.f32.xlu0 %v278
    %v280 = vpop.xlane.xlu0 %279
    %v281 = vlog2.pop %v280
    %v282 = vmul.f32 %v281, 0.6931472
    %v283 = vadd.f32 %v274, %v282
    %v284 = vsel %vm271, %v283, 0.0
    %v285 = vsub.f32 %v264, %v284
    %286 = vst [vmem:[#allocation8] sm:$0xff] %v285
    // Predicated region
    $region34: #{tpu_custom_call.1} parent=1 // pred_check
      _
    $region35: #{tpu_custom_call.1} parent=1 // pred_check_branch
      %288 = sbr.rel (0) target = $region37
    $region36: #{tpu_custom_call.1} parent=1 // pred_region
      %s290 = ssub.s32 128, 128
      %291 = vsyncadd [#allocation4], %s290
      %s293 = sshll.u32 [#allocation8], 4
      %s294 = int_to_ptr.vmem [resolvable:$true] %s293
      %296 = dma.vmem_to_hbm [thread:$0]  %s294, 128, %s5, [#allocation4]
    $region37: #{tpu_custom_call.1} parent=1 // pred_fallthru
      _
    // Predicated region
    $region38: #{tpu_custom_call.1} parent=1 // pred_check
      _
    $region39: #{tpu_custom_call.1} parent=1 // pred_check_branch
      %298 = sbr.rel (0) target = $region41
    $region40: #{tpu_custom_call.1} parent=1 // pred_region
      %299 = dma.done [#allocation4], 128
    $region41: #{tpu_custom_call.1} parent=1 // pred_fallthru
      _
    %300 = vsyncpa [#allocation3], 1
    %301 = vsyncpa [#allocation6], 1
    %302 = vsyncpa [#allocation4], 1

</llo_original>
